<compile_context>
chip_gen: v7x
topology: tpu7x:2x2x1
jax: 0.10.0
libtpu: 0.0.40
codegen_flags: <defaults>
</compile_context>

<pallas_src>
import jax
import jax.numpy as jnp
from jax.experimental import pallas as pl
from jax.experimental.pallas import tpu as pltpu


def qnetwork_kernel(x_ref, w1_ref, b1_ref, w2_ref, b2_ref, w3_ref, b3_ref, out_ref):
    # Fused MLP tile: intermediates never touch HBM.
    x = x_ref[...]                                                    # bf16 [tb, D]

    # fc1 + ReLU : bf16 x bf16 MXU matmul, f32 accumulation, f32 elementwise.
    h1 = jnp.dot(x, w1_ref[...], preferred_element_type=jnp.float32) + b1_ref[...]
    h1 = jnp.maximum(h1, 0.0)                                         # f32 [tb, 512]

    # fc2 + ReLU : cast activations back to bf16 to keep the bf16 MXU path.
    h2 = jnp.dot(h1.astype(jnp.bfloat16), w2_ref[...],
                 preferred_element_type=jnp.float32) + b2_ref[...]
    h2 = jnp.maximum(h2, 0.0)                                         # f32 [tb, 256]

    # fc3 (out_features == 1): broadcast-multiply on the VPU, reduce across
    # lanes on the XLU. b3 is a scalar read from SMEM.
    h3 = jnp.sum(h2 * w3_ref[...], axis=-1) + b3_ref[0, 0]            # f32 [tb]

    # sigmoid: exp on the EUP, divide replaced by EUP reciprocal (approx).
    sig = pl.reciprocal(1.0 + jnp.exp(-h3), approx=True)              # f32 [tb]

    # Lane-dense store: the whole tile's results land in one full-lane row.
    out_ref[...] = sig.reshape(1, 1, -1).astype(out_ref.dtype)        # [1, 1, tb]


def _round_up(n, m):
    return ((n + m - 1) // m) * m


def _sanitize_tile(tile_b):
    # Batch tile must be a multiple of 16 (bf16 sublane packing); prefer a
    # multiple of 256 for clean MXU cadence on v6e/v7x once tiles are large.
    if tile_b >= 256:
        return _round_up(tile_b, 256)
    return max(16, _round_up(tile_b, 16))


def _choose_tile_b(B, tile_b):
    tile_b = _sanitize_tile(tile_b)
    b16 = _round_up(B, 16)
    if b16 > tile_b:
        return tile_b
    if b16 >= 512:
        # A single tile would cover the batch but it's big enough to split:
        # keep >=2 grid steps so v7x's second TensorCore gets work.
        return min(tile_b, _round_up(pl.cdiv(b16, 2), 256))
    return b16


def prepare_params(params):
    """One-time prep of kernel-ready params: bf16 matmul weights (cached so the
    f32->bf16 cast is not re-issued on every forward)."""
    w1, b1, w2, b2, w3, b3 = params
    return (w1.astype(jnp.bfloat16), b1, w2.astype(jnp.bfloat16), b2, w3, b3)


def qnetwork_forward(x, kernel_params, tile_b=512):
    """x: [B, D] float32. kernel_params from prepare_params(). Returns [B, 1] f32."""
    w1b, b1, w2b, b2, w3, b3 = kernel_params
    B, D = x.shape

    tb = _choose_tile_b(B, tile_b)
    Bp = _round_up(B, tb)
    if Bp != B:
        x = jnp.pad(x, ((0, Bp - B), (0, 0)))
    nb = Bp // tb

    # Activations cast to bf16 (cheap: B x D); weights already bf16.
    xb = x.astype(jnp.bfloat16)

    out = pl.pallas_call(
        qnetwork_kernel,
        out_shape=jax.ShapeDtypeStruct((nb, 1, tb), jnp.float32),
        grid=(nb,),
        in_specs=[
            pl.BlockSpec((tb, D), lambda i: (i, 0)),        # x: tiled over batch
            pl.BlockSpec(w1b.shape, lambda i: (0, 0)),      # weights/biases: constant
            pl.BlockSpec(b1.shape, lambda i: (0, 0)),       # index_map -> DMA'd once,
            pl.BlockSpec(w2b.shape, lambda i: (0, 0)),      # stay VMEM-resident
            pl.BlockSpec(b2.shape, lambda i: (0, 0)),
            pl.BlockSpec(w3.shape, lambda i: (0, 0)),       # lane-dense [1, 256]
            pl.BlockSpec(memory_space=pltpu.MemorySpace.SMEM),  # b3 scalar in SMEM
        ],
        out_specs=pl.BlockSpec((1, 1, tb), lambda i: (i, 0, 0)),  # lane-dense output
        compiler_params=pltpu.CompilerParams(
            dimension_semantics=("parallel",),              # megacore split on v7x
            vmem_limit_bytes=32 << 20,                      # headroom for tb up to 1024
        ),
    )(xb, w1b, b1, w2b, b2, w3, b3)

    return out.reshape(-1)[:B].reshape(B, 1)


def init_params(key, input_size):
    # Deterministic f32 master params mimicking nn.Linear default init
    # (bound = 1/sqrt(fan_in)). Weights stored [in, out]; biases [1, out];
    # w3 stored lane-dense [1, 256]; b3 is a [1, 1] scalar.
    ks = jax.random.split(key, 6)

    def linear(kw, kb, fan_in, fan_out):
        bound = 1.0 / jnp.sqrt(fan_in)
        w = jax.random.uniform(kw, (fan_in, fan_out), jnp.float32, -bound, bound)
        b = jax.random.uniform(kb, (1, fan_out), jnp.float32, -bound, bound)
        return w, b

    w1, b1 = linear(ks[0], ks[1], input_size, 512)
    w2, b2 = linear(ks[2], ks[3], 512, 256)
    w3, b3 = linear(ks[4], ks[5], 256, 1)
    w3 = w3.T  # [1, 256] lane-dense
    return (w1, b1, w2, b2, w3, b3)


def qnetwork_ref(x, params):
    # Pure-JAX reference mirroring the kernel's mixed precision (bf16 weights /
    # activations into the matmuls, f32 accumulation and elementwise math).
    # Uses the exact sigmoid; kernel uses the EUP approx reciprocal, so the
    # comparison tolerance below is loosened accordingly.
    w1, b1, w2, b2, w3, b3 = params
    xb = x.astype(jnp.bfloat16)
    h1 = jnp.maximum(
        jnp.dot(xb, w1.astype(jnp.bfloat16), preferred_element_type=jnp.float32) + b1, 0.0)
    h2 = jnp.maximum(
        jnp.dot(h1.astype(jnp.bfloat16), w2.astype(jnp.bfloat16),
                preferred_element_type=jnp.float32) + b2, 0.0)
    h3 = jnp.sum(h2 * w3, axis=-1, keepdims=True) + b3
    return 1.0 / (1.0 + jnp.exp(-h3))


if __name__ == "__main__":
    key = jax.random.PRNGKey(0)
    k_param, k_x = jax.random.split(key)

    input_size = 32
    batch = 8

    params = init_params(k_param, input_size)          # f32 master params
    kernel_params = prepare_params(params)             # cached bf16 weights
    x = jax.random.normal(k_x, (batch, input_size), jnp.float32)

    out = qnetwork_forward(x, kernel_params)
    out = jax.block_until_ready(out)

    ref = qnetwork_ref(x, params)
    assert out.shape == (batch, 1), out.shape
    # Tolerance covers the approx-reciprocal sigmoid and MXU-vs-XLA f32 accumulation order.
    assert jnp.allclose(out, ref, atol=2e-3, rtol=2e-3), float(jnp.abs(out - ref).max())

    print("KERNEL_OK")
</pallas_src>

<mosaic_0001>
module attributes {stable_mosaic.version = 11 : i64} {
  func.func @qnetwork_kernel(%arg0: i32, %arg1: memref<16x32xbf16, #tpu.memory_space<vmem>>, %arg2: memref<32x512xbf16, #tpu.memory_space<vmem>>, %arg3: memref<1x512xf32, #tpu.memory_space<vmem>>, %arg4: memref<512x256xbf16, #tpu.memory_space<vmem>>, %arg5: memref<1x256xf32, #tpu.memory_space<vmem>>, %arg6: memref<1x256xf32, #tpu.memory_space<vmem>>, %arg7: memref<1x1xf32, #tpu.memory_space<smem>>, %arg8: memref<1x1x16xf32, #tpu.memory_space<vmem>>) attributes {dimension_semantics = [#tpu.dimension_semantics<parallel>], iteration_bounds = array<i64: 1>, scalar_prefetch = 0 : i64, scratch_operands = 0 : i64, tpu.core_type = #tpu.core_type<tc>, window_params = [{transform_indices = @transform_0, window_bounds = array<i64: 16, 32>}, {pipeline_mode = #tpu.pipeline_mode<synchronous>, transform_indices = @transform_1, window_bounds = array<i64: 32, 512>}, {pipeline_mode = #tpu.pipeline_mode<synchronous>, transform_indices = @transform_2, window_bounds = array<i64: 1, 512>}, {pipeline_mode = #tpu.pipeline_mode<synchronous>, transform_indices = @transform_3, window_bounds = array<i64: 512, 256>}, {pipeline_mode = #tpu.pipeline_mode<synchronous>, transform_indices = @transform_4, window_bounds = array<i64: 1, 256>}, {pipeline_mode = #tpu.pipeline_mode<synchronous>, transform_indices = @transform_5, window_bounds = array<i64: 1, 256>}, {transform_indices = @transform_6, window_bounds = array<i64: 1, 1>}, {transform_indices = @transform_7, window_bounds = array<i64: 1, 1, 16>}]} {
    %c0 = arith.constant 0 : index
    %c0_0 = arith.constant 0 : index
    %0 = vector.load %arg1[%c0, %c0_0] : memref<16x32xbf16, #tpu.memory_space<vmem>>, vector<16x32xbf16>
    %c0_1 = arith.constant 0 : index
    %c0_2 = arith.constant 0 : index
    %1 = vector.load %arg2[%c0_1, %c0_2] : memref<32x512xbf16, #tpu.memory_space<vmem>>, vector<32x512xbf16>
    %cst = arith.constant dense<0.000000e+00> : vector<16x512xf32>
    %2 = tpu.matmul %0, %1, %cst {dimension_numbers = #tpu.dot_dimension_numbers<[1], [0], [0], [1], [0, 0, 1, 1], [], []>} : vector<16x32xbf16>, vector<32x512xbf16>, vector<16x512xf32> -> vector<16x512xf32>
    %c0_3 = arith.constant 0 : index
    %c0_4 = arith.constant 0 : index
    %3 = vector.load %arg3[%c0_3, %c0_4] : memref<1x512xf32, #tpu.memory_space<vmem>>, vector<1x512xf32>
    %4 = vector.broadcast %3 : vector<1x512xf32> to vector<16x512xf32>
    %5 = arith.addf %2, %4 : vector<16x512xf32>
    %cst_5 = arith.constant 0.000000e+00 : f32
    %6 = vector.broadcast %cst_5 : f32 to vector<16x512xf32>
    %7 = arith.maximumf %5, %6 : vector<16x512xf32>
    %8 = arith.truncf %7 : vector<16x512xf32> to vector<16x512xbf16>
    %c0_6 = arith.constant 0 : index
    %c0_7 = arith.constant 0 : index
    %9 = vector.load %arg4[%c0_6, %c0_7] : memref<512x256xbf16, #tpu.memory_space<vmem>>, vector<512x256xbf16>
    %cst_8 = arith.constant dense<0.000000e+00> : vector<16x256xf32>
    %10 = tpu.matmul %8, %9, %cst_8 {dimension_numbers = #tpu.dot_dimension_numbers<[1], [0], [0], [1], [0, 0, 1, 1], [], []>} : vector<16x512xbf16>, vector<512x256xbf16>, vector<16x256xf32> -> vector<16x256xf32>
    %c0_9 = arith.constant 0 : index
    %c0_10 = arith.constant 0 : index
    %11 = vector.load %arg5[%c0_9, %c0_10] : memref<1x256xf32, #tpu.memory_space<vmem>>, vector<1x256xf32>
    %12 = vector.broadcast %11 : vector<1x256xf32> to vector<16x256xf32>
    %13 = arith.addf %10, %12 : vector<16x256xf32>
    %cst_11 = arith.constant 0.000000e+00 : f32
    %14 = vector.broadcast %cst_11 : f32 to vector<16x256xf32>
    %15 = arith.maximumf %13, %14 : vector<16x256xf32>
    %c0_12 = arith.constant 0 : index
    %c0_13 = arith.constant 0 : index
    %16 = vector.load %arg6[%c0_12, %c0_13] : memref<1x256xf32, #tpu.memory_space<vmem>>, vector<1x256xf32>
    %17 = vector.broadcast %16 : vector<1x256xf32> to vector<16x256xf32>
    %18 = arith.mulf %15, %17 : vector<16x256xf32>
    %cst_14 = arith.constant dense<0.000000e+00> : vector<16xf32>
    %19 = vector.multi_reduction <add>, %18, %cst_14 [1] : vector<16x256xf32> to vector<16xf32>
    %c0_15 = arith.constant 0 : index
    %c0_16 = arith.constant 0 : index
    %20 = memref.load %arg7[%c0_15, %c0_16] : memref<1x1xf32, #tpu.memory_space<smem>>
    %21 = vector.broadcast %20 : f32 to vector<16xf32>
    %22 = arith.addf %19, %21 : vector<16xf32>
    %cst_17 = arith.constant 0.000000e+00 : f32
    %23 = vector.broadcast %cst_17 : f32 to vector<16xf32>
    %24 = arith.subf %23, %22 : vector<16xf32>
    %25 = math.exp %24 : vector<16xf32>
    %cst_18 = arith.constant 1.000000e+00 : f32
    %26 = vector.broadcast %cst_18 : f32 to vector<16xf32>
    %27 = arith.addf %26, %25 : vector<16xf32>
    %28 = tpu.reciprocal %27 {approx = true} : vector<16xf32> -> vector<16xf32>
    %29 = vector.shape_cast %28 : vector<16xf32> to vector<1x1x16xf32>
    %c0_19 = arith.constant 0 : index
    %c0_20 = arith.constant 0 : index
    %c0_21 = arith.constant 0 : index
    %30 = vector.load %arg8[%c0_19, %c0_20, %c0_21] : memref<1x1x16xf32, #tpu.memory_space<vmem>>, vector<1x1x16xf32>
    tpu.vector_store %arg8[%c0_19, %c0_20, %c0_21], %29 {strides = array<i32>} : memref<1x1x16xf32, #tpu.memory_space<vmem>>, vector<1x1x16xf32>,
    return
  }
  func.func @transform_0(%arg0: i32) -> (i32, i32) {
    %c0_i32 = arith.constant 0 : i32
    %c0_i32_0 = arith.constant 0 : i32
    return %arg0, %c0_i32 : i32, i32
  }
  func.func @transform_1(%arg0: i32) -> (i32, i32) {
    %c0_i32 = arith.constant 0 : i32
    %c0_i32_0 = arith.constant 0 : i32
    %c0_i32_1 = arith.constant 0 : i32
    return %c0_i32, %c0_i32_0 : i32, i32
  }
  func.func @transform_2(%arg0: i32) -> (i32, i32) {
    %c0_i32 = arith.constant 0 : i32
    %c0_i32_0 = arith.constant 0 : i32
    %c0_i32_1 = arith.constant 0 : i32
    return %c0_i32, %c0_i32_0 : i32, i32
  }
  func.func @transform_3(%arg0: i32) -> (i32, i32) {
    %c0_i32 = arith.constant 0 : i32
    %c0_i32_0 = arith.constant 0 : i32
    %c0_i32_1 = arith.constant 0 : i32
    return %c0_i32, %c0_i32_0 : i32, i32
  }
  func.func @transform_4(%arg0: i32) -> (i32, i32) {
    %c0_i32 = arith.constant 0 : i32
    %c0_i32_0 = arith.constant 0 : i32
    %c0_i32_1 = arith.constant 0 : i32
    return %c0_i32, %c0_i32_0 : i32, i32
  }
  func.func @transform_5(%arg0: i32) -> (i32, i32) {
    %c0_i32 = arith.constant 0 : i32
    %c0_i32_0 = arith.constant 0 : i32
    %c0_i32_1 = arith.constant 0 : i32
    return %c0_i32, %c0_i32_0 : i32, i32
  }
  func.func @transform_6(%arg0: i32) -> (i32, i32) {
    %c0_i32 = arith.constant 0 : i32
    %c0_i32_0 = arith.constant 0 : i32
    %c0_i32_1 = arith.constant 0 : i32
    return %c0_i32, %c0_i32_0 : i32, i32
  }
  func.func @transform_7(%arg0: i32) -> (i32, i32, i32) {
    %c0_i32 = arith.constant 0 : i32
    %c0_i32_0 = arith.constant 0 : i32
    %c0_i32_1 = arith.constant 0 : i32
    return %arg0, %c0_i32, %c0_i32_0 : i32, i32, i32
  }
}

</mosaic_0001>

<llo_original>
// kernel: tpu_custom_call.1
$region0: #{tpu_custom_call.1}
  #allocation0 [shape = 'u32[]', space=smem, size = 0x4, offset = 0x4, fixed_abs, tag = 'smem constant byte address 0x4 - core index']
  #allocation1 [shape = 'u32[144,128]{1,0:T(1,128)}', space=vmem, size = 0x12000, scoped, tag = 'internal scratch']
  #allocation2 [shape = 'f32[1,1]{1,0:T(1,128)S(6)}', space=smem, size = 0x200, scoped, tag = 'scoped memory for tpu_custom_call.1']
  %s0 = inlined_call_operand.hbm [shape: bf16[16,32], index: 0, kind: input, shape index: {}]
  %s1 = inlined_call_operand.hbm [shape: bf16[32,512], index: 1, kind: input, shape index: {}]
  %s2 = inlined_call_operand.vmem [shape: f32[1,512], index: 2, kind: input, shape index: {}]
  %s3 = inlined_call_operand.hbm [shape: bf16[512,256], index: 3, kind: input, shape index: {}]
  %s4 = inlined_call_operand.vmem [shape: f32[1,256], index: 4, kind: input, shape index: {}]
  %s5 = inlined_call_operand.vmem [shape: f32[1,256], index: 5, kind: input, shape index: {}]
  %s6 = inlined_call_operand.<no memory space> [shape: f32[1,1], index: 6, kind: input, shape index: {}]
  %s7 = inlined_call_operand.hbm [shape: f32[1,1,16], index: 7, kind: output, shape index: {}]
  %s8 = sld [smem:[#allocation0]]
  $region50: #{tpu_custom_call.1} parent=0
    _
  %s10 = ssub.s32 1, %s8
  %s11 = scalar_select 0, %s10, %s8
  %12 = sst [smem:[#allocation2]] %s6
  $region1: #{tpu_custom_call.1} parent=0
    #allocation3 [shape = 'u8[4096]{0}', space=vmem, size = 0x1000, scoped, tag = 'input window, operand 0, single buffered']
    #allocation4 [shape = 's32[1]{0}', space=sflag, size = 0x4, scoped, tag = 'scoped memory for tpu_custom_call.1']
    #allocation5 [shape = 's32[1]{0}', space=sflag, size = 0x4, scoped, tag = 'scoped memory for tpu_custom_call.1']
    #allocation6 [shape = 'u8[32768]{0}', space=vmem, size = 0x8000, scoped, tag = 'input window, operand 1, single buffered']
    #allocation7 [shape = 's32[1]{0}', space=sflag, size = 0x4, scoped, tag = 'scoped memory for tpu_custom_call.1']
    #allocation8 [shape = 'u8[262144]{0}', space=vmem, size = 0x40000, scoped, tag = 'input window, operand 3, single buffered']
    #allocation9 [shape = 'u8[512]{0}', space=vmem, size = 0x400, scoped, tag = 'output window, operand 0, single buffered']
    %13 = vsyncpa [#allocation4], 0
    %14 = vsyncpa [#allocation7], 0
    %15 = vsyncpa [#allocation5], 0
    // Predicated region
    $region2: #{tpu_custom_call.1} parent=1 // pred_check
      _
    $region3: #{tpu_custom_call.1} parent=1 // pred_check_branch
      %17 = sbr.rel (0) target = $region5
    $region4: #{tpu_custom_call.1} parent=1 // pred_region
      %s19 = ssub.s32 128, 128
      %20 = vsyncadd [#allocation4], %s19
      %s21 = sshll.u32 [#allocation3], 4
      %s22 = int_to_ptr.vmem [resolvable:$true] %s21
      %27 = dma.hbm_to_vmem [thread:$0]  %s0, 128, %s22, [#allocation4], 64, 64, 4
    $region5: #{tpu_custom_call.1} parent=1 // pred_fallthru
      _
    // Predicated region
    $region6: #{tpu_custom_call.1} parent=1 // pred_check
      _
    $region7: #{tpu_custom_call.1} parent=1 // pred_check_branch
      %29 = sbr.rel (0) target = $region9
    $region8: #{tpu_custom_call.1} parent=1 // pred_region
      %s31 = ssub.s32 1024, 1024
      %32 = vsyncadd [#allocation7], %s31
      %s33 = sshll.u32 [#allocation6], 4
      %s34 = int_to_ptr.vmem [resolvable:$true] %s33
      %39 = dma.hbm_to_vmem [thread:$0]  %s1, 1024, %s34, [#allocation7], 256, 256, 16
    $region9: #{tpu_custom_call.1} parent=1 // pred_fallthru
      _
    // Predicated region
    $region10: #{tpu_custom_call.1} parent=1 // pred_check
      _
    $region11: #{tpu_custom_call.1} parent=1 // pred_check_branch
      %41 = sbr.rel (0) target = $region13
    $region12: #{tpu_custom_call.1} parent=1 // pred_region
      _
    $region13: #{tpu_custom_call.1} parent=1 // pred_fallthru
      _
    // Predicated region
    $region14: #{tpu_custom_call.1} parent=1 // pred_check
      _
    $region15: #{tpu_custom_call.1} parent=1 // pred_check_branch
      %43 = sbr.rel (0) target = $region17
    $region16: #{tpu_custom_call.1} parent=1 // pred_region
      %s45 = ssub.s32 8192, 8192
      %46 = vsyncadd [#allocation7], %s45
      %s47 = sshll.u32 [#allocation8], 4
      %s48 = int_to_ptr.vmem [resolvable:$true] %s47
      %53 = dma.hbm_to_vmem [thread:$0]  %s3, 8192, %s48, [#allocation7], 128, 128, 8
    $region17: #{tpu_custom_call.1} parent=1 // pred_fallthru
      _
    // Predicated region
    $region18: #{tpu_custom_call.1} parent=1 // pred_check
      _
    $region19: #{tpu_custom_call.1} parent=1 // pred_check_branch
      %55 = sbr.rel (0) target = $region21
    $region20: #{tpu_custom_call.1} parent=1 // pred_region
      _
    $region21: #{tpu_custom_call.1} parent=1 // pred_fallthru
      _
    // Predicated region
    $region22: #{tpu_custom_call.1} parent=1 // pred_check
      _
    $region23: #{tpu_custom_call.1} parent=1 // pred_check_branch
      %57 = sbr.rel (0) target = $region25
    $region24: #{tpu_custom_call.1} parent=1 // pred_region
      _
    $region25: #{tpu_custom_call.1} parent=1 // pred_fallthru
      _
    // Predicated region
    $region26: #{tpu_custom_call.1} parent=1 // pred_check
      _
    $region27: #{tpu_custom_call.1} parent=1 // pred_check_branch
      %59 = sbr.rel (0) target = $region29
    $region28: #{tpu_custom_call.1} parent=1 // pred_region
      _
    $region29: #{tpu_custom_call.1} parent=1 // pred_fallthru
      _
    // Predicated region
    $region30: #{tpu_custom_call.1} parent=1 // pred_check
      _
    $region31: #{tpu_custom_call.1} parent=1 // pred_check_branch
      %61 = sbr.rel (0) target = $region33
    $region32: #{tpu_custom_call.1} parent=1 // pred_region
      %62 = dma.done [#allocation4], 128
    $region33: #{tpu_custom_call.1} parent=1 // pred_fallthru
      _
    // Predicated region
    $region34: #{tpu_custom_call.1} parent=1 // pred_check
      _
    $region35: #{tpu_custom_call.1} parent=1 // pred_check_branch
      %64 = sbr.rel (0) target = $region37
    $region36: #{tpu_custom_call.1} parent=1 // pred_region
      %65 = dma.done [#allocation7], 1024
    $region37: #{tpu_custom_call.1} parent=1 // pred_fallthru
      _
    // Predicated region
    $region38: #{tpu_custom_call.1} parent=1 // pred_check
      _
    $region39: #{tpu_custom_call.1} parent=1 // pred_check_branch
      %67 = sbr.rel (0) target = $region41
    $region40: #{tpu_custom_call.1} parent=1 // pred_region
      %68 = dma.done [#allocation7], 8192
    $region41: #{tpu_custom_call.1} parent=1 // pred_fallthru
      _
    %v70 = vld [vmem:[#allocation3] sm:$0xf]
    %v71 = vld [vmem:[#allocation3 + $0x4] sm:$0xf]
    %v72 = vld [vmem:[#allocation6] sm:$0xff]
    %v73 = vld [vmem:[#allocation6 + $0x8] sm:$0xff]
    %v74 = vld [vmem:[#allocation6 + $0x10] sm:$0xff]
    %v75 = vld [vmem:[#allocation6 + $0x18] sm:$0xff]
    %v76 = vld [vmem:[#allocation6 + $0x20] sm:$0xff]
    %v77 = vld [vmem:[#allocation6 + $0x28] sm:$0xff]
    %v78 = vld [vmem:[#allocation6 + $0x30] sm:$0xff]
    %v79 = vld [vmem:[#allocation6 + $0x38] sm:$0xff]
    %v80 = vld [vmem:[%s2] sm:$0xf]
    %v82 = vlaneseq
    %v83 = vshrl.u32 %v82, 7
    %v84 = vsub.s32 0, %v83
    %v85 = vrot.slane %v80, %v84
    %v86 = vlaneseq
    %v87 = vshrl.u32 %v86, 7
    %v88 = vsub.s32 1, %v87
    %v89 = vrot.slane %v80, %v88
    %v90 = vlaneseq
    %v91 = vshrl.u32 %v90, 7
    %v92 = vsub.s32 2, %v91
    %v93 = vrot.slane %v80, %v92
    %v94 = vlaneseq
    %v95 = vshrl.u32 %v94, 7
    %v96 = vsub.s32 3, %v95
    %v97 = vrot.slane %v80, %v96
    %v104 = vunpack.c.l.b16 %v70
    %v105 = vunpack.c.l.b16 %v71
    %v106 = vpack.c.b16 %v105, %v104
    %v115 = vunpack.c.l.b16 %v72
    %v116 = vunpack.c.h.b16 %v72
    %v117 = vunpack.c.l.b16 %v73
    %v118 = vunpack.c.h.b16 %v73
    %v119 = vunpack.c.l.b16 %v74
    %v120 = vunpack.c.h.b16 %v74
    %v121 = vunpack.c.l.b16 %v75
    %v122 = vunpack.c.h.b16 %v75
    %v123 = vunpack.c.l.b16 %v76
    %v124 = vunpack.c.h.b16 %v76
    %v125 = vunpack.c.l.b16 %v77
    %v126 = vunpack.c.h.b16 %v77
    %v127 = vunpack.c.l.b16 %v78
    %v128 = vunpack.c.h.b16 %v78
    %v129 = vunpack.c.l.b16 %v79
    %v130 = vunpack.c.h.b16 %v79
    %v131 = vpack.c.b16 %v119, %v115
    %v132 = vpack.c.b16 %v120, %v116
    %v133 = vpack.c.b16 %v121, %v117
    %v134 = vpack.c.b16 %v122, %v118
    %v135 = vpack.c.b16 %v127, %v123
    %v136 = vpack.c.b16 %v128, %v124
    %v137 = vpack.c.b16 %v129, %v125
    %v138 = vpack.c.b16 %v130, %v126
    %vm147 = vcmask 261120
    %v149 = vsel %vm147, %v106, 0
    %151 = vmatprep.subr.bf16.mxu0 %v132
    %152 = vmatpush1.bf16.msra.mxu0 %v131
    %153 = vmatprep.subr.bf16.mxu0 %v136
    %154 = vmatpush1.bf16.msra.mxu0 %v135
    %155 = vmatprep.subr.bf16.mxu0 0
    %156 = vmatpush1.bf16.msra.mxu0 0
    %157 = vmatprep.subr.bf16.mxu0 0
    %158 = vmatpush1.bf16.msra.mxu0 0
    %159 = vmatprep.subr.bf16.mxu0 0
    %160 = vmatpush1.bf16.msra.mxu0 0
    %161 = vmatprep.subr.bf16.mxu0 0
    %162 = vmatpush1.bf16.msra.mxu0 0
    %163 = vmatprep.subr.bf16.mxu0 0
    %164 = vmatpush1.bf16.msra.mxu0 0
    %165 = vmatprep.subr.bf16.mxu0 0
    %166 = vmatpush1.bf16.msra.mxu0 0
    %167 = vmatprep.subr.bf16.mxu0 0
    %168 = vmatpush1.bf16.msra.mxu0 0
    %169 = vmatprep.subr.bf16.mxu0 0
    %170 = vmatpush1.bf16.msra.mxu0 0
    %171 = vmatprep.subr.bf16.mxu0 0
    %172 = vmatpush1.bf16.msra.mxu0 0
    %173 = vmatprep.subr.bf16.mxu0 0
    %174 = vmatpush1.bf16.msra.mxu0 0
    %175 = vmatprep.subr.bf16.mxu0 0
    %176 = vmatpush1.bf16.msra.mxu0 0
    %177 = vmatprep.subr.bf16.mxu0 0
    %178 = vmatpush1.bf16.msra.mxu0 0
    %179 = vmatprep.subr.bf16.mxu0 0
    %180 = vmatpush1.bf16.msra.mxu0 0
    %181 = vmatprep.subr.bf16.mxu0 0
    %182 = vmatpush1.bf16.msra.mxu0 0
    %183 = vmatprep.mubr.bf16.mxu0 0
    %184 = vmatmul.mubr.bf16.gmra.mrb[0].mxu0 %v149
    %v185 = vpop.f32.mrb[0].mxu0
    %v186 = vadd.f32 %v85, %v185
    %v187 = vpop.f32.mrb[0].mxu0
    %v188 = vadd.f32 %v89, %v187
    %v189 = vpop.f32.mrb[0].mxu0
    %v190 = vadd.f32 %v85, %v189
    %v191 = vpop.f32.mrb[0].mxu0
    %v192 = vadd.f32 %v89, %v191
    %193 = vdwg.mxu0
    %194 = vmatprep.subr.bf16.mxu0 %v134
    %195 = vmatpush1.bf16.msra.mxu0 %v133
    %196 = vmatprep.subr.bf16.mxu0 %v138
    %197 = vmatpush1.bf16.msra.mxu0 %v137
    %198 = vmatprep.subr.bf16.mxu0 0
    %199 = vmatpush1.bf16.msra.mxu0 0
    %200 = vmatprep.subr.bf16.mxu0 0
    %201 = vmatpush1.bf16.msra.mxu0 0
    %202 = vmatprep.subr.bf16.mxu0 0
    %203 = vmatpush1.bf16.msra.mxu0 0
    %204 = vmatprep.subr.bf16.mxu0 0
    %205 = vmatpush1.bf16.msra.mxu0 0
    %206 = vmatprep.subr.bf16.mxu0 0
    %207 = vmatpush1.bf16.msra.mxu0 0
    %208 = vmatprep.subr.bf16.mxu0 0
    %209 = vmatpush1.bf16.msra.mxu0 0
    %210 = vmatprep.subr.bf16.mxu0 0
    %211 = vmatpush1.bf16.msra.mxu0 0
    %212 = vmatprep.subr.bf16.mxu0 0
    %213 = vmatpush1.bf16.msra.mxu0 0
    %214 = vmatprep.subr.bf16.mxu0 0
    %215 = vmatpush1.bf16.msra.mxu0 0
    %216 = vmatprep.subr.bf16.mxu0 0
    %217 = vmatpush1.bf16.msra.mxu0 0
    %218 = vmatprep.subr.bf16.mxu0 0
    %219 = vmatpush1.bf16.msra.mxu0 0
    %220 = vmatprep.subr.bf16.mxu0 0
    %221 = vmatpush1.bf16.msra.mxu0 0
    %222 = vmatprep.subr.bf16.mxu0 0
    %223 = vmatpush1.bf16.msra.mxu0 0
    %224 = vmatprep.subr.bf16.mxu0 0
    %225 = vmatpush1.bf16.msra.mxu0 0
    %226 = vmatprep.mubr.bf16.mxu0 0
    %227 = vmatmul.mubr.bf16.gmra.mrb[0].mxu0 %v149
    %v228 = vpop.f32.mrb[0].mxu0
    %v229 = vadd.f32 %v93, %v228
    %v230 = vpop.f32.mrb[0].mxu0
    %v231 = vadd.f32 %v97, %v230
    %v232 = vpop.f32.mrb[0].mxu0
    %v233 = vadd.f32 %v93, %v232
    %v234 = vpop.f32.mrb[0].mxu0
    %v235 = vadd.f32 %v97, %v234
    %236 = vdwg.mxu0
    %v237 = vmax.f32 %v186, 0.0
    %v238 = vmax.f32 %v188, 0.0
    %v239 = vmax.f32 %v229, 0.0
    %v240 = vmax.f32 %v231, 0.0
    %v241 = vmax.f32 %v190, 0.0
    %v242 = vmax.f32 %v192, 0.0
    %v243 = vmax.f32 %v233, 0.0
    %v244 = vmax.f32 %v235, 0.0
    %v245 = vpack.c.bf16 %v241, %v237
    %v246 = vpack.c.bf16 %v242, %v238
    %v247 = vpack.c.bf16 %v243, %v239
    %v248 = vpack.c.bf16 %v244, %v240
    %v249 = vld [vmem:[#allocation8] sm:$0xff]
    %v250 = vld [vmem:[#allocation8 + $0x8] sm:$0xff]
    %v251 = vld [vmem:[#allocation8 + $0x10] sm:$0xff]
    %v252 = vld [vmem:[#allocation8 + $0x18] sm:$0xff]
    %v253 = vld [vmem:[#allocation8 + $0x20] sm:$0xff]
    %v254 = vld [vmem:[#allocation8 + $0x28] sm:$0xff]
    %v255 = vld [vmem:[#allocation8 + $0x30] sm:$0xff]
    %v256 = vld [vmem:[#allocation8 + $0x38] sm:$0xff]
    %v257 = vld [vmem:[#allocation8 + $0x40] sm:$0xff]
    %v258 = vld [vmem:[#allocation8 + $0x48] sm:$0xff]
    %v259 = vld [vmem:[#allocation8 + $0x50] sm:$0xff]
    %v260 = vld [vmem:[#allocation8 + $0x58] sm:$0xff]
    %v261 = vld [vmem:[#allocation8 + $0x60] sm:$0xff]
    %v262 = vld [vmem:[#allocation8 + $0x68] sm:$0xff]
    %v263 = vld [vmem:[#allocation8 + $0x70] sm:$0xff]
    %v264 = vld [vmem:[#allocation8 + $0x78] sm:$0xff]
    %v265 = vld [vmem:[#allocation8 + $0x80] sm:$0xff]
    %v266 = vld [vmem:[#allocation8 + $0x88] sm:$0xff]
    %v267 = vld [vmem:[#allocation8 + $0x90] sm:$0xff]
    %v268 = vld [vmem:[#allocation8 + $0x98] sm:$0xff]
    %v269 = vld [vmem:[#allocation8 + $0xa0] sm:$0xff]
    %v270 = vld [vmem:[#allocation8 + $0xa8] sm:$0xff]
    %v271 = vld [vmem:[#allocation8 + $0xb0] sm:$0xff]
    %v272 = vld [vmem:[#allocation8 + $0xb8] sm:$0xff]
    %v273 = vld [vmem:[#allocation8 + $0xc0] sm:$0xff]
    %v274 = vld [vmem:[#allocation8 + $0xc8] sm:$0xff]
    %v275 = vld [vmem:[#allocation8 + $0xd0] sm:$0xff]
    %v276 = vld [vmem:[#allocation8 + $0xd8] sm:$0xff]
    %v277 = vld [vmem:[#allocation8 + $0xe0] sm:$0xff]
    %v278 = vld [vmem:[#allocation8 + $0xe8] sm:$0xff]
    %v279 = vld [vmem:[#allocation8 + $0xf0] sm:$0xff]
    %v280 = vld [vmem:[#allocation8 + $0xf8] sm:$0xff]
    %v281 = vld [vmem:[#allocation8 + $0x100] sm:$0xff]
    %v282 = vld [vmem:[#allocation8 + $0x108] sm:$0xff]
    %v283 = vld [vmem:[#allocation8 + $0x110] sm:$0xff]
    %v284 = vld [vmem:[#allocation8 + $0x118] sm:$0xff]
    %v285 = vld [vmem:[#allocation8 + $0x120] sm:$0xff]
    %v286 = vld [vmem:[#allocation8 + $0x128] sm:$0xff]
    %v287 = vld [vmem:[#allocation8 + $0x130] sm:$0xff]
    %v288 = vld [vmem:[#allocation8 + $0x138] sm:$0xff]
    %v289 = vld [vmem:[#allocation8 + $0x140] sm:$0xff]
    %v290 = vld [vmem:[#allocation8 + $0x148] sm:$0xff]
    %v291 = vld [vmem:[#allocation8 + $0x150] sm:$0xff]
    %v292 = vld [vmem:[#allocation8 + $0x158] sm:$0xff]
    %v293 = vld [vmem:[#allocation8 + $0x160] sm:$0xff]
    %v294 = vld [vmem:[#allocation8 + $0x168] sm:$0xff]
    %v295 = vld [vmem:[#allocation8 + $0x170] sm:$0xff]
    %v296 = vld [vmem:[#allocation8 + $0x178] sm:$0xff]
    %v297 = vld [vmem:[#allocation8 + $0x180] sm:$0xff]
    %v298 = vld [vmem:[#allocation8 + $0x188] sm:$0xff]
    %v299 = vld [vmem:[#allocation8 + $0x190] sm:$0xff]
    %v300 = vld [vmem:[#allocation8 + $0x198] sm:$0xff]
    %v301 = vld [vmem:[#allocation8 + $0x1a0] sm:$0xff]
    %v302 = vld [vmem:[#allocation8 + $0x1a8] sm:$0xff]
    %v303 = vld [vmem:[#allocation8 + $0x1b0] sm:$0xff]
    %v304 = vld [vmem:[#allocation8 + $0x1b8] sm:$0xff]
    %v305 = vld [vmem:[#allocation8 + $0x1c0] sm:$0xff]
    %v306 = vld [vmem:[#allocation8 + $0x1c8] sm:$0xff]
    %v307 = vld [vmem:[#allocation8 + $0x1d0] sm:$0xff]
    %v308 = vld [vmem:[#allocation8 + $0x1d8] sm:$0xff]
    %v309 = vld [vmem:[#allocation8 + $0x1e0] sm:$0xff]
    %v310 = vld [vmem:[#allocation8 + $0x1e8] sm:$0xff]
    %v311 = vld [vmem:[#allocation8 + $0x1f0] sm:$0xff]
    %v312 = vld [vmem:[#allocation8 + $0x1f8] sm:$0xff]
    %v313 = vld [vmem:[%s4] sm:$0x3]
    %v315 = vlaneseq
    %v316 = vshrl.u32 %v315, 7
    %v317 = vsub.s32 0, %v316
    %v318 = vrot.slane %v313, %v317
    %v319 = vlaneseq
    %v320 = vshrl.u32 %v319, 7
    %v321 = vsub.s32 1, %v320
    %v322 = vrot.slane %v313, %v321
    %v389 = vunpack.c.l.b16 %v249
    %v390 = vunpack.c.h.b16 %v249
    %v391 = vunpack.c.l.b16 %v250
    %v392 = vunpack.c.h.b16 %v250
    %v393 = vunpack.c.l.b16 %v251
    %v394 = vunpack.c.h.b16 %v251
    %v395 = vunpack.c.l.b16 %v252
    %v396 = vunpack.c.h.b16 %v252
    %v397 = vunpack.c.l.b16 %v253
    %v398 = vunpack.c.h.b16 %v253
    %v399 = vunpack.c.l.b16 %v254
    %v400 = vunpack.c.h.b16 %v254
    %v401 = vunpack.c.l.b16 %v255
    %v402 = vunpack.c.h.b16 %v255
    %v403 = vunpack.c.l.b16 %v256
    %v404 = vunpack.c.h.b16 %v256
    %v405 = vunpack.c.l.b16 %v257
    %v406 = vunpack.c.h.b16 %v257
    %v407 = vunpack.c.l.b16 %v258
    %v408 = vunpack.c.h.b16 %v258
    %v409 = vunpack.c.l.b16 %v259
    %v410 = vunpack.c.h.b16 %v259
    %v411 = vunpack.c.l.b16 %v260
    %v412 = vunpack.c.h.b16 %v260
    %v413 = vunpack.c.l.b16 %v261
    %v414 = vunpack.c.h.b16 %v261
    %v415 = vunpack.c.l.b16 %v262
    %v416 = vunpack.c.h.b16 %v262
    %v417 = vunpack.c.l.b16 %v263
    %v418 = vunpack.c.h.b16 %v263
    %v419 = vunpack.c.l.b16 %v264
    %v420 = vunpack.c.h.b16 %v264
    %v421 = vunpack.c.l.b16 %v265
    %v422 = vunpack.c.h.b16 %v265
    %v423 = vunpack.c.l.b16 %v266
    %v424 = vunpack.c.h.b16 %v266
    %v425 = vunpack.c.l.b16 %v267
    %v426 = vunpack.c.h.b16 %v267
    %v427 = vunpack.c.l.b16 %v268
    %v428 = vunpack.c.h.b16 %v268
    %v429 = vunpack.c.l.b16 %v269
    %v430 = vunpack.c.h.b16 %v269
    %v431 = vunpack.c.l.b16 %v270
    %v432 = vunpack.c.h.b16 %v270
    %v433 = vunpack.c.l.b16 %v271
    %v434 = vunpack.c.h.b16 %v271
    %v435 = vunpack.c.l.b16 %v272
    %v436 = vunpack.c.h.b16 %v272
    %v437 = vunpack.c.l.b16 %v273
    %v438 = vunpack.c.h.b16 %v273
    %v439 = vunpack.c.l.b16 %v274
    %v440 = vunpack.c.h.b16 %v274
    %v441 = vunpack.c.l.b16 %v275
    %v442 = vunpack.c.h.b16 %v275
    %v443 = vunpack.c.l.b16 %v276
    %v444 = vunpack.c.h.b16 %v276
    %v445 = vunpack.c.l.b16 %v277
    %v446 = vunpack.c.h.b16 %v277
    %v447 = vunpack.c.l.b16 %v278
    %v448 = vunpack.c.h.b16 %v278
    %v449 = vunpack.c.l.b16 %v279
    %v450 = vunpack.c.h.b16 %v279
    %v451 = vunpack.c.l.b16 %v280
    %v452 = vunpack.c.h.b16 %v280
    %v453 = vunpack.c.l.b16 %v281
    %v454 = vunpack.c.h.b16 %v281
    %v455 = vunpack.c.l.b16 %v282
    %v456 = vunpack.c.h.b16 %v282
    %v457 = vunpack.c.l.b16 %v283
    %v458 = vunpack.c.h.b16 %v283
    %v459 = vunpack.c.l.b16 %v284
    %v460 = vunpack.c.h.b16 %v284
    %v461 = vunpack.c.l.b16 %v285
    %v462 = vunpack.c.h.b16 %v285
    %v463 = vunpack.c.l.b16 %v286
    %v464 = vunpack.c.h.b16 %v286
    %v465 = vunpack.c.l.b16 %v287
    %v466 = vunpack.c.h.b16 %v287
    %v467 = vunpack.c.l.b16 %v288
    %v468 = vunpack.c.h.b16 %v288
    %v469 = vunpack.c.l.b16 %v289
    %v470 = vunpack.c.h.b16 %v289
    %v471 = vunpack.c.l.b16 %v290
    %v472 = vunpack.c.h.b16 %v290
    %v473 = vunpack.c.l.b16 %v291
    %v474 = vunpack.c.h.b16 %v291
    %v475 = vunpack.c.l.b16 %v292
    %v476 = vunpack.c.h.b16 %v292
    %v477 = vunpack.c.l.b16 %v293
    %v478 = vunpack.c.h.b16 %v293
    %v479 = vunpack.c.l.b16 %v294
    %v480 = vunpack.c.h.b16 %v294
    %v481 = vunpack.c.l.b16 %v295
    %v482 = vunpack.c.h.b16 %v295
    %v483 = vunpack.c.l.b16 %v296
    %v484 = vunpack.c.h.b16 %v296
    %v485 = vunpack.c.l.b16 %v297
    %v486 = vunpack.c.h.b16 %v297
    %v487 = vunpack.c.l.b16 %v298
    %v488 = vunpack.c.h.b16 %v298
    %v489 = vunpack.c.l.b16 %v299
    %v490 = vunpack.c.h.b16 %v299
    %v491 = vunpack.c.l.b16 %v300
    %v492 = vunpack.c.h.b16 %v300
    %v493 = vunpack.c.l.b16 %v301
    %v494 = vunpack.c.h.b16 %v301
    %v495 = vunpack.c.l.b16 %v302
    %v496 = vunpack.c.h.b16 %v302
    %v497 = vunpack.c.l.b16 %v303
    %v498 = vunpack.c.h.b16 %v303
    %v499 = vunpack.c.l.b16 %v304
    %v500 = vunpack.c.h.b16 %v304
    %v501 = vunpack.c.l.b16 %v305
    %v502 = vunpack.c.h.b16 %v305
    %v503 = vunpack.c.l.b16 %v306
    %v504 = vunpack.c.h.b16 %v306
    %v505 = vunpack.c.l.b16 %v307
    %v506 = vunpack.c.h.b16 %v307
    %v507 = vunpack.c.l.b16 %v308
    %v508 = vunpack.c.h.b16 %v308
    %v509 = vunpack.c.l.b16 %v309
    %v510 = vunpack.c.h.b16 %v309
    %v511 = vunpack.c.l.b16 %v310
    %v512 = vunpack.c.h.b16 %v310
    %v513 = vunpack.c.l.b16 %v311
    %v514 = vunpack.c.h.b16 %v311
    %v515 = vunpack.c.l.b16 %v312
    %v516 = vunpack.c.h.b16 %v312
    %v517 = vpack.c.b16 %v391, %v389
    %v518 = vpack.c.b16 %v392, %v390
    %v519 = vpack.c.b16 %v395, %v393
    %v520 = vpack.c.b16 %v396, %v394
    %v521 = vpack.c.b16 %v399, %v397
    %v522 = vpack.c.b16 %v400, %v398
    %v523 = vpack.c.b16 %v403, %v401
    %v524 = vpack.c.b16 %v404, %v402
    %v525 = vpack.c.b16 %v407, %v405
    %v526 = vpack.c.b16 %v408, %v406
    %v527 = vpack.c.b16 %v411, %v409
    %v528 = vpack.c.b16 %v412, %v410
    %v529 = vpack.c.b16 %v415, %v413
    %v530 = vpack.c.b16 %v416, %v414
    %v531 = vpack.c.b16 %v419, %v417
    %v532 = vpack.c.b16 %v420, %v418
    %v533 = vpack.c.b16 %v423, %v421
    %v534 = vpack.c.b16 %v424, %v422
    %v535 = vpack.c.b16 %v427, %v425
    %v536 = vpack.c.b16 %v428, %v426
    %v537 = vpack.c.b16 %v431, %v429
    %v538 = vpack.c.b16 %v432, %v430
    %v539 = vpack.c.b16 %v435, %v433
    %v540 = vpack.c.b16 %v436, %v434
    %v541 = vpack.c.b16 %v439, %v437
    %v542 = vpack.c.b16 %v440, %v438
    %v543 = vpack.c.b16 %v443, %v441
    %v544 = vpack.c.b16 %v444, %v442
    %v545 = vpack.c.b16 %v447, %v445
    %v546 = vpack.c.b16 %v448, %v446
    %v547 = vpack.c.b16 %v451, %v449
    %v548 = vpack.c.b16 %v452, %v450
    %v549 = vpack.c.b16 %v455, %v453
    %v550 = vpack.c.b16 %v456, %v454
    %v551 = vpack.c.b16 %v459, %v457
    %v552 = vpack.c.b16 %v460, %v458
    %v553 = vpack.c.b16 %v463, %v461
    %v554 = vpack.c.b16 %v464, %v462
    %v555 = vpack.c.b16 %v467, %v465
    %v556 = vpack.c.b16 %v468, %v466
    %v557 = vpack.c.b16 %v471, %v469
    %v558 = vpack.c.b16 %v472, %v470
    %v559 = vpack.c.b16 %v475, %v473
    %v560 = vpack.c.b16 %v476, %v474
    %v561 = vpack.c.b16 %v479, %v477
    %v562 = vpack.c.b16 %v480, %v478
    %v563 = vpack.c.b16 %v483, %v481
    %v564 = vpack.c.b16 %v484, %v482
    %v565 = vpack.c.b16 %v487, %v485
    %v566 = vpack.c.b16 %v488, %v486
    %v567 = vpack.c.b16 %v491, %v489
    %v568 = vpack.c.b16 %v492, %v490
    %v569 = vpack.c.b16 %v495, %v493
    %v570 = vpack.c.b16 %v496, %v494
    %v571 = vpack.c.b16 %v499, %v497
    %v572 = vpack.c.b16 %v500, %v498
    %v573 = vpack.c.b16 %v503, %v501
    %v574 = vpack.c.b16 %v504, %v502
    %v575 = vpack.c.b16 %v507, %v505
    %v576 = vpack.c.b16 %v508, %v506
    %v577 = vpack.c.b16 %v511, %v509
    %v578 = vpack.c.b16 %v512, %v510
    %v579 = vpack.c.b16 %v515, %v513
    %v580 = vpack.c.b16 %v516, %v514
    %645 = vmatprep.subr.bf16.mxu0 %v518
    %646 = vmatpush1.bf16.msra.mxu0 %v517
    %647 = vmatprep.subr.bf16.mxu0 %v520
    %648 = vmatpush1.bf16.msra.mxu0 %v519
    %649 = vmatprep.subr.bf16.mxu0 %v522
    %650 = vmatpush1.bf16.msra.mxu0 %v521
    %651 = vmatprep.subr.bf16.mxu0 %v524
    %652 = vmatpush1.bf16.msra.mxu0 %v523
    %653 = vmatprep.subr.bf16.mxu0 %v526
    %654 = vmatpush1.bf16.msra.mxu0 %v525
    %655 = vmatprep.subr.bf16.mxu0 %v528
    %656 = vmatpush1.bf16.msra.mxu0 %v527
    %657 = vmatprep.subr.bf16.mxu0 %v530
    %658 = vmatpush1.bf16.msra.mxu0 %v529
    %659 = vmatprep.subr.bf16.mxu0 %v532
    %660 = vmatpush1.bf16.msra.mxu0 %v531
    %661 = vmatprep.subr.bf16.mxu0 %v534
    %662 = vmatpush1.bf16.msra.mxu0 %v533
    %663 = vmatprep.subr.bf16.mxu0 %v536
    %664 = vmatpush1.bf16.msra.mxu0 %v535
    %665 = vmatprep.subr.bf16.mxu0 %v538
    %666 = vmatpush1.bf16.msra.mxu0 %v537
    %667 = vmatprep.subr.bf16.mxu0 %v540
    %668 = vmatpush1.bf16.msra.mxu0 %v539
    %669 = vmatprep.subr.bf16.mxu0 %v542
    %670 = vmatpush1.bf16.msra.mxu0 %v541
    %671 = vmatprep.subr.bf16.mxu0 %v544
    %672 = vmatpush1.bf16.msra.mxu0 %v543
    %673 = vmatprep.subr.bf16.mxu0 %v546
    %674 = vmatpush1.bf16.msra.mxu0 %v545
    %675 = vmatprep.subr.bf16.mxu0 %v548
    %676 = vmatpush1.bf16.msra.mxu0 %v547
    %677 = vmatprep.mubr.bf16.mxu0 %v246
    %678 = vmatmul.mubr.bf16.gmra.mrb[0].mxu0 %v245
    %v679 = vpop.f32.mrb[0].mxu0
    %v680 = vadd.f32 %v318, %v679
    %v681 = vpop.f32.mrb[0].mxu0
    %v682 = vadd.f32 %v322, %v681
    %v683 = vpop.f32.mrb[0].mxu0
    %v684 = vadd.f32 %v318, %v683
    %v685 = vpop.f32.mrb[0].mxu0
    %v686 = vadd.f32 %v322, %v685
    %687 = vdwg.mxu0
    %688 = vmatprep.subr.bf16.mxu0 %v550
    %689 = vmatpush1.bf16.msra.mxu0 %v549
    %690 = vmatprep.subr.bf16.mxu0 %v552
    %691 = vmatpush1.bf16.msra.mxu0 %v551
    %692 = vmatprep.subr.bf16.mxu0 %v554
    %693 = vmatpush1.bf16.msra.mxu0 %v553
    %694 = vmatprep.subr.bf16.mxu0 %v556
    %695 = vmatpush1.bf16.msra.mxu0 %v555
    %696 = vmatprep.subr.bf16.mxu0 %v558
    %697 = vmatpush1.bf16.msra.mxu0 %v557
    %698 = vmatprep.subr.bf16.mxu0 %v560
    %699 = vmatpush1.bf16.msra.mxu0 %v559
    %700 = vmatprep.subr.bf16.mxu0 %v562
    %701 = vmatpush1.bf16.msra.mxu0 %v561
    %702 = vmatprep.subr.bf16.mxu0 %v564
    %703 = vmatpush1.bf16.msra.mxu0 %v563
    %704 = vmatprep.subr.bf16.mxu0 %v566
    %705 = vmatpush1.bf16.msra.mxu0 %v565
    %706 = vmatprep.subr.bf16.mxu0 %v568
    %707 = vmatpush1.bf16.msra.mxu0 %v567
    %708 = vmatprep.subr.bf16.mxu0 %v570
    %709 = vmatpush1.bf16.msra.mxu0 %v569
    %710 = vmatprep.subr.bf16.mxu0 %v572
    %711 = vmatpush1.bf16.msra.mxu0 %v571
    %712 = vmatprep.subr.bf16.mxu0 %v574
    %713 = vmatpush1.bf16.msra.mxu0 %v573
    %714 = vmatprep.subr.bf16.mxu0 %v576
    %715 = vmatpush1.bf16.msra.mxu0 %v575
    %716 = vmatprep.subr.bf16.mxu0 %v578
    %717 = vmatpush1.bf16.msra.mxu0 %v577
    %718 = vmatprep.subr.bf16.mxu0 %v580
    %719 = vmatpush1.bf16.msra.mxu0 %v579
    %720 = vmatprep.mubr.bf16.mxu0 %v248
    %721 = vmatmul.mubr.bf16.gmra.mrb[0].mxu0 %v247
    %v722 = vpop.f32.mrb[0].mxu0
    %v723 = vadd.f32 %v680, %v722
    %v724 = vpop.f32.mrb[0].mxu0
    %v725 = vadd.f32 %v682, %v724
    %v726 = vpop.f32.mrb[0].mxu0
    %v727 = vadd.f32 %v684, %v726
    %v728 = vpop.f32.mrb[0].mxu0
    %v729 = vadd.f32 %v686, %v728
    %730 = vdwg.mxu0
    %v731 = vmax.f32 %v723, 0.0
    %v732 = vmax.f32 %v725, 0.0
    %v733 = vmax.f32 %v727, 0.0
    %v734 = vmax.f32 %v729, 0.0
    %v735 = vld [vmem:[%s5] sm:$0x3]
    %v737 = vlaneseq
    %v738 = vshrl.u32 %v737, 7
    %v739 = vsub.s32 0, %v738
    %v740 = vrot.slane %v735, %v739
    %v741 = vlaneseq
    %v742 = vshrl.u32 %v741, 7
    %v743 = vsub.s32 1, %v742
    %v744 = vrot.slane %v735, %v743
    %v747 = vmul.f32 %v731, %v740
    %v748 = vmul.f32 %v732, %v744
    %v749 = vmul.f32 %v733, %v740
    %v750 = vmul.f32 %v734, %v744
    %v751 = vadd.f32 %v747, %v748
    %752 = vadd.xlane.f32.xlu0 %v751
    %v753 = vpop.xlane.xlu0 %752
    %v754 = vadd.f32 %v749, %v750
    %755 = vadd.xlane.f32.xlu0 %v754
    %v756 = vpop.xlane.xlu0 %755
    %s757 = sld [smem:[#allocation2]]
    %v758 = vstv %s757
    %v759 = vadd.f32 %v753, %v758
    %v760 = vadd.f32 %v756, %v758
    %v761 = vsub.f32 0.0, %v759
    %v762 = vsub.f32 0.0, %v760
    %v763 = vmul.f32 %v761, 1.442695
    %v764 = vpow.pop %v763
    %v765 = vmul.f32 %v762, 1.442695
    %v766 = vpow.pop %v765
    %v767 = vadd.f32 %v764, 1.0
    %v768 = vadd.f32 %v766, 1.0
    %v769 = vrcp.pop %v767
    %v770 = vrcp.pop %v768
    %v773 = vlaneseq
    %v774 = vand.u32 %v773, 127
    %v775 = vlaneseq
    %v776 = vshrl.u32 %v775, 7
    %v777 = vsub.s32 %v774, %v776
    %v778 = vrot.slane %v769, %v777
    %v779 = vadd.s32 %v774, 4294967288
    %v780 = vlaneseq
    %v781 = vshrl.u32 %v780, 7
    %v782 = vsub.s32 %v779, %v781
    %v783 = vrot.slane %v770, %v782
    %vm784 = vcmask 130112
    %v785 = vsel %vm784, %v783, %v778
    %vm787 = vcmask 122880
    %788 = vst.msk [vmem:[#allocation9] sm:$0x1] %vm787, %v785
    // Predicated region
    $region42: #{tpu_custom_call.1} parent=1 // pred_check
      _
    $region43: #{tpu_custom_call.1} parent=1 // pred_check_branch
      %790 = sbr.rel (0) target = $region45
    $region44: #{tpu_custom_call.1} parent=1 // pred_region
      %s792 = ssub.s32 16, 16
      %793 = vsyncadd [#allocation5], %s792
      %s795 = sshll.u32 [#allocation9], 4
      %s796 = int_to_ptr.vmem [resolvable:$true] %s795
      %798 = dma.vmem_to_hbm [thread:$0]  %s796, 16, %s7, [#allocation5]
    $region45: #{tpu_custom_call.1} parent=1 // pred_fallthru
      _
    // Predicated region
    $region46: #{tpu_custom_call.1} parent=1 // pred_check
      _
    $region47: #{tpu_custom_call.1} parent=1 // pred_check_branch
      %800 = sbr.rel (0) target = $region49
    $region48: #{tpu_custom_call.1} parent=1 // pred_region
      %801 = dma.done [#allocation5], 16
    $region49: #{tpu_custom_call.1} parent=1 // pred_fallthru
      _
    %802 = vsyncpa [#allocation4], 1
    %803 = vsyncpa [#allocation7], 1
    %804 = vsyncpa [#allocation5], 1

</llo_original>
